<compile_context>
chip_gen: v7x
topology: tpu7x:2x2x1
jax: 0.10.0
libtpu: 0.0.40
codegen_flags: <defaults>
</compile_context>

<pallas_src>
import jax
import jax.numpy as jnp
from jax.experimental import pallas as pl
from jax.experimental.pallas import tpu as pltpu


def _critic_kernel(x_ref, w1t_ref, b1_ref, w2t_ref, b2_ref, w3_ref, b3_ref,
                   o_ref):
    # layer1: single [tb, S+A] x [S+A, 400] MXU pass (bf16 operands, f32 acc)
    h1 = jnp.dot(x_ref[...].astype(jnp.bfloat16), w1t_ref[...],
                 preferred_element_type=jnp.float32) + b1_ref[...]
    h1 = jnp.maximum(h1, 0.0)

    # layer2: [tb, 400] x [400, 300] MXU pass
    h2 = jnp.dot(h1.astype(jnp.bfloat16), w2t_ref[...],
                 preferred_element_type=jnp.float32) + b2_ref[...]
    h2 = jnp.maximum(h2, 0.0)

    # layer3: out_dim == 1 -> skip the 1-lane MXU matmul; VPU mul + XLU lane
    # reduction.  w3_ref is the f32 [1, 300] row; b3 is an SMEM scalar.
    o_ref[...] = jnp.sum(h2 * w3_ref[...], axis=-1, keepdims=True) + b3_ref[0]


def prepare_critic_params(params):
    """One-time conversion from PyTorch layout (W: [out, in], b: [out]) to the
    kernel layout.  Call at init; NOT per forward step."""
    w1 = jnp.asarray(params["w1"], jnp.float32)   # [400, S+A]
    w2 = jnp.asarray(params["w2"], jnp.float32)   # [300, 400]
    w3 = jnp.asarray(params["w3"], jnp.float32)   # [1, 300]
    return {
        "w1t": w1.T.astype(jnp.bfloat16),                               # [S+A, 400]
        "b1": jnp.asarray(params["b1"], jnp.float32).reshape(1, -1),    # [1, 400]
        "w2t": w2.T.astype(jnp.bfloat16),                               # [400, 300]
        "b2": jnp.asarray(params["b2"], jnp.float32).reshape(1, -1),    # [1, 300]
        "w3": w3,                                                       # [1, 300] f32 (VPU)
        "b3": jnp.asarray(params["b3"], jnp.float32).reshape(1,),       # scalar -> SMEM
    }


def _round_up(n, m):
    return ((n + m - 1) // m) * m


def critic_forward(state, action, kparams, *, max_block_b=1024):
    """state: [B, S] f32, action: [B, A] f32, kparams from prepare_critic_params."""
    B = state.shape[0]
    # Fuse the torch.cat into a single lane-contiguous input (tiny B x 12 copy
    # per call; lets layer1 run as ONE MXU matmul inside the kernel).
    x = jnp.concatenate([jnp.asarray(state, jnp.float32),
                         jnp.asarray(action, jnp.float32)], axis=-1)
    SA = x.shape[1]
    H1 = kparams["w1t"].shape[1]   # 400
    H2 = kparams["w2t"].shape[1]   # 300

    # Batch tile: one tile for small B; otherwise split into >=2 tiles so the
    # "parallel" grid axis can shard across v7x's two TensorCores.
    if B <= 256:
        tb = B
    else:
        tb = min(max_block_b, _round_up(pl.cdiv(B, 2), 8))
    nb = pl.cdiv(B, tb)

    batch_map = lambda i: (i, 0)   # activations / output: tile over batch
    resident = lambda i: (0, 0)    # weights: same block every step -> stay in VMEM

    flops = 2 * B * (SA * H1 + H1 * H2 + H2)
    bytes_accessed = (4 * B * (SA + 1)                       # x in, q out (f32)
                      + 2 * (SA * H1 + H1 * H2)              # bf16 matmul weights
                      + 4 * (H1 + H2 + H2 + 1))              # f32 biases + w3 row

    return pl.pallas_call(
        _critic_kernel,
        out_shape=jax.ShapeDtypeStruct((B, 1), jnp.float32),
        grid=(nb,),
        in_specs=[
            pl.BlockSpec((tb, SA), batch_map),                   # x = [state|action]
            pl.BlockSpec((SA, H1), resident),                    # W1.T (bf16)
            pl.BlockSpec((1, H1), resident),                     # b1
            pl.BlockSpec((H1, H2), resident),                    # W2.T (bf16)
            pl.BlockSpec((1, H2), resident),                     # b2
            pl.BlockSpec((1, H2), resident),                     # w3 row (f32)
            pl.BlockSpec(memory_space=pltpu.MemorySpace.SMEM),   # b3 scalar
        ],
        out_specs=pl.BlockSpec((tb, 1), batch_map),
        compiler_params=pltpu.CompilerParams(
            dimension_semantics=("parallel",),       # shard batch tiles on v7x
            vmem_limit_bytes=64 * 1024 * 1024,       # headroom above v5e/v6e defaults
        ),
        cost_estimate=pl.CostEstimate(
            flops=flops, transcendentals=0, bytes_accessed=bytes_accessed),
    )(x, kparams["w1t"], kparams["b1"], kparams["w2t"], kparams["b2"],
      kparams["w3"], kparams["b3"])


def init_critic_params(key, input_state, output_action):
    """Deterministic init mimicking PyTorch nn.Linear default U[-1/sqrt(fan_in), +...]."""
    in_dim = input_state + output_action
    dims = [(400, in_dim), (300, 400), (1, 300)]
    params = {}
    for idx, (out_d, in_d) in enumerate(dims, start=1):
        key, kw, kb = jax.random.split(key, 3)
        bound = 1.0 / jnp.sqrt(in_d)
        params[f"w{idx}"] = jax.random.uniform(
            kw, (out_d, in_d), jnp.float32, -bound, bound)
        params[f"b{idx}"] = jax.random.uniform(
            kb, (out_d,), jnp.float32, -bound, bound)
    return params


if __name__ == "__main__":
    key = jax.random.PRNGKey(0)
    input_state = 8
    output_action = 4
    batch = 8

    k_params, k_state, k_action = jax.random.split(key, 3)
    params = init_critic_params(k_params, input_state, output_action)
    kparams = prepare_critic_params(params)   # one-time, init-side

    state = jax.random.normal(k_state, (batch, input_state), jnp.float32)
    action = jax.random.normal(k_action, (batch, output_action), jnp.float32)

    q = critic_forward(state, action, kparams)
    jax.block_until_ready(q)
    assert q.shape == (batch, 1)

    x = jnp.concatenate([state, action], axis=-1)

    # Reference 1: pure-JAX with the SAME bf16 weights / cast points -> tight.
    h1 = jnp.maximum(jnp.dot(x.astype(jnp.bfloat16), kparams["w1t"],
                             preferred_element_type=jnp.float32) + kparams["b1"], 0.0)
    h2 = jnp.maximum(jnp.dot(h1.astype(jnp.bfloat16), kparams["w2t"],
                             preferred_element_type=jnp.float32) + kparams["b2"], 0.0)
    q_ref_bf = jnp.sum(h2 * kparams["w3"], axis=-1, keepdims=True) + kparams["b3"]
    assert jnp.allclose(q, q_ref_bf, atol=1e-4, rtol=1e-4), \
        float(jnp.max(jnp.abs(q - q_ref_bf)))

    # Reference 2: full-f32 PyTorch-semantics forward -> loose (bf16 MXU operands).
    h1f = jnp.maximum(x @ params["w1"].T + params["b1"], 0.0)
    h2f = jnp.maximum(h1f @ params["w2"].T + params["b2"], 0.0)
    q_ref_f32 = h2f @ params["w3"].T + params["b3"]
    assert jnp.allclose(q, q_ref_f32, atol=3e-2, rtol=3e-2), \
        float(jnp.max(jnp.abs(q - q_ref_f32)))

    print("KERNEL_OK")
</pallas_src>

<mosaic_0001>
module attributes {stable_mosaic.version = 11 : i64} {
  func.func @_critic_kernel(%arg0: i32, %arg1: memref<8x12xf32, #tpu.memory_space<vmem>>, %arg2: memref<12x400xbf16, #tpu.memory_space<vmem>>, %arg3: memref<1x400xf32, #tpu.memory_space<vmem>>, %arg4: memref<400x300xbf16, #tpu.memory_space<vmem>>, %arg5: memref<1x300xf32, #tpu.memory_space<vmem>>, %arg6: memref<1x300xf32, #tpu.memory_space<vmem>>, %arg7: memref<1xf32, #tpu.memory_space<smem>>, %arg8: memref<8x1xf32, #tpu.memory_space<vmem>>) attributes {dimension_semantics = [#tpu.dimension_semantics<parallel>], iteration_bounds = array<i64: 1>, scalar_prefetch = 0 : i64, scratch_operands = 0 : i64, tpu.core_type = #tpu.core_type<tc>, window_params = [{transform_indices = @transform_0, window_bounds = array<i64: 8, 12>}, {pipeline_mode = #tpu.pipeline_mode<synchronous>, transform_indices = @transform_1, window_bounds = array<i64: 12, 400>}, {pipeline_mode = #tpu.pipeline_mode<synchronous>, transform_indices = @transform_2, window_bounds = array<i64: 1, 400>}, {pipeline_mode = #tpu.pipeline_mode<synchronous>, transform_indices = @transform_3, window_bounds = array<i64: 400, 300>}, {pipeline_mode = #tpu.pipeline_mode<synchronous>, transform_indices = @transform_4, window_bounds = array<i64: 1, 300>}, {pipeline_mode = #tpu.pipeline_mode<synchronous>, transform_indices = @transform_5, window_bounds = array<i64: 1, 300>}, {transform_indices = @transform_6, window_bounds = array<i64: 1>}, {transform_indices = @transform_7, window_bounds = array<i64: 8, 1>}]} {
    %c0 = arith.constant 0 : index
    %c0_0 = arith.constant 0 : index
    %0 = vector.load %arg1[%c0, %c0_0] : memref<8x12xf32, #tpu.memory_space<vmem>>, vector<8x12xf32>
    %1 = arith.truncf %0 : vector<8x12xf32> to vector<8x12xbf16>
    %c0_1 = arith.constant 0 : index
    %c0_2 = arith.constant 0 : index
    %2 = vector.load %arg2[%c0_1, %c0_2] : memref<12x400xbf16, #tpu.memory_space<vmem>>, vector<12x400xbf16>
    %cst = arith.constant dense<0.000000e+00> : vector<8x400xf32>
    %3 = tpu.matmul %1, %2, %cst {dimension_numbers = #tpu.dot_dimension_numbers<[1], [0], [0], [1], [0, 0, 1, 1], [], []>} : vector<8x12xbf16>, vector<12x400xbf16>, vector<8x400xf32> -> vector<8x400xf32>
    %c0_3 = arith.constant 0 : index
    %c0_4 = arith.constant 0 : index
    %4 = vector.load %arg3[%c0_3, %c0_4] : memref<1x400xf32, #tpu.memory_space<vmem>>, vector<1x400xf32>
    %5 = vector.broadcast %4 : vector<1x400xf32> to vector<8x400xf32>
    %6 = arith.addf %3, %5 : vector<8x400xf32>
    %cst_5 = arith.constant 0.000000e+00 : f32
    %7 = vector.broadcast %cst_5 : f32 to vector<8x400xf32>
    %8 = arith.maximumf %6, %7 : vector<8x400xf32>
    %9 = arith.truncf %8 : vector<8x400xf32> to vector<8x400xbf16>
    %c0_6 = arith.constant 0 : index
    %c0_7 = arith.constant 0 : index
    %10 = vector.load %arg4[%c0_6, %c0_7] : memref<400x300xbf16, #tpu.memory_space<vmem>>, vector<400x300xbf16>
    %cst_8 = arith.constant dense<0.000000e+00> : vector<8x300xf32>
    %11 = tpu.matmul %9, %10, %cst_8 {dimension_numbers = #tpu.dot_dimension_numbers<[1], [0], [0], [1], [0, 0, 1, 1], [], []>} : vector<8x400xbf16>, vector<400x300xbf16>, vector<8x300xf32> -> vector<8x300xf32>
    %c0_9 = arith.constant 0 : index
    %c0_10 = arith.constant 0 : index
    %12 = vector.load %arg5[%c0_9, %c0_10] : memref<1x300xf32, #tpu.memory_space<vmem>>, vector<1x300xf32>
    %13 = vector.broadcast %12 : vector<1x300xf32> to vector<8x300xf32>
    %14 = arith.addf %11, %13 : vector<8x300xf32>
    %cst_11 = arith.constant 0.000000e+00 : f32
    %15 = vector.broadcast %cst_11 : f32 to vector<8x300xf32>
    %16 = arith.maximumf %14, %15 : vector<8x300xf32>
    %c0_12 = arith.constant 0 : index
    %c0_13 = arith.constant 0 : index
    %17 = vector.load %arg6[%c0_12, %c0_13] : memref<1x300xf32, #tpu.memory_space<vmem>>, vector<1x300xf32>
    %18 = vector.broadcast %17 : vector<1x300xf32> to vector<8x300xf32>
    %19 = arith.mulf %16, %18 : vector<8x300xf32>
    %cst_14 = arith.constant dense<0.000000e+00> : vector<8xf32>
    %20 = vector.multi_reduction <add>, %19, %cst_14 [1] : vector<8x300xf32> to vector<8xf32>
    %21 = vector.shape_cast %20 : vector<8xf32> to vector<8x1xf32>
    %c0_15 = arith.constant 0 : index
    %22 = memref.load %arg7[%c0_15] : memref<1xf32, #tpu.memory_space<smem>>
    %23 = vector.broadcast %22 : f32 to vector<8x1xf32>
    %24 = arith.addf %21, %23 : vector<8x1xf32>
    %c0_16 = arith.constant 0 : index
    %c0_17 = arith.constant 0 : index
    %25 = vector.load %arg8[%c0_16, %c0_17] : memref<8x1xf32, #tpu.memory_space<vmem>>, vector<8x1xf32>
    tpu.vector_store %arg8[%c0_16, %c0_17], %24 {strides = array<i32>} : memref<8x1xf32, #tpu.memory_space<vmem>>, vector<8x1xf32>,
    return
  }
  func.func @transform_0(%arg0: i32) -> (i32, i32) {
    %c0_i32 = arith.constant 0 : i32
    %c0_i32_0 = arith.constant 0 : i32
    return %arg0, %c0_i32 : i32, i32
  }
  func.func @transform_1(%arg0: i32) -> (i32, i32) {
    %c0_i32 = arith.constant 0 : i32
    %c0_i32_0 = arith.constant 0 : i32
    %c0_i32_1 = arith.constant 0 : i32
    return %c0_i32, %c0_i32_0 : i32, i32
  }
  func.func @transform_2(%arg0: i32) -> (i32, i32) {
    %c0_i32 = arith.constant 0 : i32
    %c0_i32_0 = arith.constant 0 : i32
    %c0_i32_1 = arith.constant 0 : i32
    return %c0_i32, %c0_i32_0 : i32, i32
  }
  func.func @transform_3(%arg0: i32) -> (i32, i32) {
    %c0_i32 = arith.constant 0 : i32
    %c0_i32_0 = arith.constant 0 : i32
    %c0_i32_1 = arith.constant 0 : i32
    return %c0_i32, %c0_i32_0 : i32, i32
  }
  func.func @transform_4(%arg0: i32) -> (i32, i32) {
    %c0_i32 = arith.constant 0 : i32
    %c0_i32_0 = arith.constant 0 : i32
    %c0_i32_1 = arith.constant 0 : i32
    return %c0_i32, %c0_i32_0 : i32, i32
  }
  func.func @transform_5(%arg0: i32) -> (i32, i32) {
    %c0_i32 = arith.constant 0 : i32
    %c0_i32_0 = arith.constant 0 : i32
    %c0_i32_1 = arith.constant 0 : i32
    return %c0_i32, %c0_i32_0 : i32, i32
  }
  func.func @transform_6(%arg0: i32) -> i32 {
    %c0_i32 = arith.constant 0 : i32
    %c0_i32_0 = arith.constant 0 : i32
    return %c0_i32 : i32
  }
  func.func @transform_7(%arg0: i32) -> (i32, i32) {
    %c0_i32 = arith.constant 0 : i32
    %c0_i32_0 = arith.constant 0 : i32
    return %arg0, %c0_i32 : i32, i32
  }
}

</mosaic_0001>

<llo_original>
// kernel: tpu_custom_call.1
$region0: #{tpu_custom_call.1}
  #allocation0 [shape = 'u32[]', space=smem, size = 0x4, offset = 0x4, fixed_abs, tag = 'smem constant byte address 0x4 - core index']
  #allocation1 [shape = 'u32[144,128]{1,0:T(1,128)}', space=vmem, size = 0x12000, scoped, tag = 'internal scratch']
  #allocation2 [shape = 'f32[1]{0:T(128)S(6)}', space=smem, size = 0x200, scoped, tag = 'scoped memory for tpu_custom_call.1']
  %s0 = inlined_call_operand.hbm [shape: f32[8,12], index: 0, kind: input, shape index: {}]
  %s1 = inlined_call_operand.hbm [shape: bf16[12,400], index: 1, kind: input, shape index: {}]
  %s2 = inlined_call_operand.hbm [shape: f32[1,400], index: 2, kind: input, shape index: {}]
  %s3 = inlined_call_operand.hbm [shape: bf16[400,300], index: 3, kind: input, shape index: {}]
  %s4 = inlined_call_operand.hbm [shape: f32[1,300], index: 4, kind: input, shape index: {}]
  %s5 = inlined_call_operand.hbm [shape: f32[1,300], index: 5, kind: input, shape index: {}]
  %s6 = inlined_call_operand.<no memory space> [shape: f32[1], index: 6, kind: input, shape index: {}]
  %s7 = inlined_call_operand.hbm [shape: f32[8,1], index: 7, kind: output, shape index: {}]
  %s8 = sld [smem:[#allocation0]]
  $region62: #{tpu_custom_call.1} parent=0
    _
  %s10 = ssub.s32 1, %s8
  %s11 = scalar_select 0, %s10, %s8
  %12 = sst [smem:[#allocation2]] %s6
  $region1: #{tpu_custom_call.1} parent=0
    #allocation3 [shape = 'u8[4096]{0}', space=vmem, size = 0x1000, scoped, tag = 'input window, operand 0, single buffered']
    #allocation4 [shape = 's32[1]{0}', space=sflag, size = 0x4, scoped, tag = 'scoped memory for tpu_custom_call.1']
    #allocation5 [shape = 's32[1]{0}', space=sflag, size = 0x4, scoped, tag = 'scoped memory for tpu_custom_call.1']
    #allocation6 [shape = 'u8[16384]{0}', space=vmem, size = 0x4000, scoped, tag = 'input window, operand 1, single buffered']
    #allocation7 [shape = 's32[1]{0}', space=sflag, size = 0x4, scoped, tag = 'scoped memory for tpu_custom_call.1']
    #allocation8 [shape = 'u8[2048]{0}', space=vmem, size = 0x800, scoped, tag = 'input window, operand 2, single buffered']
    #allocation9 [shape = 'u8[307200]{0}', space=vmem, size = 0x4b000, scoped, tag = 'input window, operand 3, single buffered']
    #allocation10 [shape = 's32[1]{0}', space=sflag, size = 0x4, scoped, tag = 'scoped memory for tpu_custom_call.1']
    #allocation11 [shape = 'u8[1536]{0}', space=vmem, size = 0x800, scoped, tag = 'input window, operand 4, single buffered']
    #allocation12 [shape = 'u8[1536]{0}', space=vmem, size = 0x800, scoped, tag = 'input window, operand 5, single buffered']
    #allocation13 [shape = 's32[1]{0}', space=sflag, size = 0x4, scoped, tag = 'scoped memory for tpu_custom_call.1']
    #allocation14 [shape = 'u8[4096]{0}', space=vmem, size = 0x1000, scoped, tag = 'output window, operand 0, single buffered']
    %13 = vsyncpa [#allocation4], 0
    %14 = vsyncpa [#allocation7], 0
    %15 = vsyncpa [#allocation10], 0
    %16 = vsyncpa [#allocation13], 0
    %17 = vsyncpa [#allocation5], 0
    // Predicated region
    $region2: #{tpu_custom_call.1} parent=1 // pred_check
      _
    $region3: #{tpu_custom_call.1} parent=1 // pred_check_branch
      %19 = sbr.rel (0) target = $region5
    $region4: #{tpu_custom_call.1} parent=1 // pred_region
      %s21 = ssub.s32 128, 128
      %22 = vsyncadd [#allocation4], %s21
      %s24 = sshll.u32 [#allocation3], 4
      %s25 = int_to_ptr.vmem [resolvable:$true] %s24
      %27 = dma.hbm_to_vmem [thread:$0]  %s0, 128, %s25, [#allocation4]
    $region5: #{tpu_custom_call.1} parent=1 // pred_fallthru
      _
    // Predicated region
    $region6: #{tpu_custom_call.1} parent=1 // pred_check
      _
    $region7: #{tpu_custom_call.1} parent=1 // pred_check_branch
      %29 = sbr.rel (0) target = $region9
    $region8: #{tpu_custom_call.1} parent=1 // pred_region
      %s31 = ssub.s32 512, 512
      %32 = vsyncadd [#allocation7], %s31
      %s33 = sshll.u32 [#allocation6], 4
      %s34 = int_to_ptr.vmem [resolvable:$true] %s33
      %39 = dma.hbm_to_vmem [thread:$0]  %s1, 512, %s34, [#allocation7], 256, 256, 16
    $region9: #{tpu_custom_call.1} parent=1 // pred_fallthru
      _
    // Predicated region
    $region10: #{tpu_custom_call.1} parent=1 // pred_check
      _
    $region11: #{tpu_custom_call.1} parent=1 // pred_check_branch
      %41 = sbr.rel (0) target = $region13
    $region12: #{tpu_custom_call.1} parent=1 // pred_region
      %s43 = ssub.s32 64, 64
      %44 = vsyncadd [#allocation7], %s43
      %s46 = sshll.u32 [#allocation8], 4
      %s47 = int_to_ptr.vmem [resolvable:$true] %s46
      %49 = dma.hbm_to_vmem [thread:$0]  %s2, 64, %s47, [#allocation7]
    $region13: #{tpu_custom_call.1} parent=1 // pred_fallthru
      _
    // Predicated region
    $region14: #{tpu_custom_call.1} parent=1 // pred_check
      _
    $region15: #{tpu_custom_call.1} parent=1 // pred_check_branch
      %51 = sbr.rel (0) target = $region17
    $region16: #{tpu_custom_call.1} parent=1 // pred_region
      %s53 = ssub.s32 9600, 9600
      %54 = vsyncadd [#allocation10], %s53
      %s55 = sshll.u32 [#allocation9], 4
      %s56 = int_to_ptr.vmem [resolvable:$true] %s55
      %61 = dma.hbm_to_vmem [thread:$0]  %s3, 9600, %s56, [#allocation10], 192, 192, 12
    $region17: #{tpu_custom_call.1} parent=1 // pred_fallthru
      _
    // Predicated region
    $region18: #{tpu_custom_call.1} parent=1 // pred_check
      _
    $region19: #{tpu_custom_call.1} parent=1 // pred_check_branch
      %63 = sbr.rel (0) target = $region21
    $region20: #{tpu_custom_call.1} parent=1 // pred_region
      %s65 = ssub.s32 48, 48
      %66 = vsyncadd [#allocation10], %s65
      %s68 = sshll.u32 [#allocation11], 4
      %s69 = int_to_ptr.vmem [resolvable:$true] %s68
      %71 = dma.hbm_to_vmem [thread:$0]  %s4, 48, %s69, [#allocation10]
    $region21: #{tpu_custom_call.1} parent=1 // pred_fallthru
      _
    // Predicated region
    $region22: #{tpu_custom_call.1} parent=1 // pred_check
      _
    $region23: #{tpu_custom_call.1} parent=1 // pred_check_branch
      %73 = sbr.rel (0) target = $region25
    $region24: #{tpu_custom_call.1} parent=1 // pred_region
      %s75 = ssub.s32 48, 48
      %76 = vsyncadd [#allocation13], %s75
      %s78 = sshll.u32 [#allocation12], 4
      %s79 = int_to_ptr.vmem [resolvable:$true] %s78
      %81 = dma.hbm_to_vmem [thread:$0]  %s5, 48, %s79, [#allocation13]
    $region25: #{tpu_custom_call.1} parent=1 // pred_fallthru
      _
    // Predicated region
    $region26: #{tpu_custom_call.1} parent=1 // pred_check
      _
    $region27: #{tpu_custom_call.1} parent=1 // pred_check_branch
      %83 = sbr.rel (0) target = $region29
    $region28: #{tpu_custom_call.1} parent=1 // pred_region
      _
    $region29: #{tpu_custom_call.1} parent=1 // pred_fallthru
      _
    // Predicated region
    $region30: #{tpu_custom_call.1} parent=1 // pred_check
      _
    $region31: #{tpu_custom_call.1} parent=1 // pred_check_branch
      %85 = sbr.rel (0) target = $region33
    $region32: #{tpu_custom_call.1} parent=1 // pred_region
      %86 = dma.done [#allocation4], 128
    $region33: #{tpu_custom_call.1} parent=1 // pred_fallthru
      _
    // Predicated region
    $region34: #{tpu_custom_call.1} parent=1 // pred_check
      _
    $region35: #{tpu_custom_call.1} parent=1 // pred_check_branch
      %88 = sbr.rel (0) target = $region37
    $region36: #{tpu_custom_call.1} parent=1 // pred_region
      %89 = dma.done [#allocation7], 512
    $region37: #{tpu_custom_call.1} parent=1 // pred_fallthru
      _
    // Predicated region
    $region38: #{tpu_custom_call.1} parent=1 // pred_check
      _
    $region39: #{tpu_custom_call.1} parent=1 // pred_check_branch
      %91 = sbr.rel (0) target = $region41
    $region40: #{tpu_custom_call.1} parent=1 // pred_region
      %92 = dma.done [#allocation7], 64
    $region41: #{tpu_custom_call.1} parent=1 // pred_fallthru
      _
    // Predicated region
    $region42: #{tpu_custom_call.1} parent=1 // pred_check
      _
    $region43: #{tpu_custom_call.1} parent=1 // pred_check_branch
      %94 = sbr.rel (0) target = $region45
    $region44: #{tpu_custom_call.1} parent=1 // pred_region
      %95 = dma.done [#allocation10], 9600
    $region45: #{tpu_custom_call.1} parent=1 // pred_fallthru
      _
    // Predicated region
    $region46: #{tpu_custom_call.1} parent=1 // pred_check
      _
    $region47: #{tpu_custom_call.1} parent=1 // pred_check_branch
      %97 = sbr.rel (0) target = $region49
    $region48: #{tpu_custom_call.1} parent=1 // pred_region
      %98 = dma.done [#allocation10], 48
    $region49: #{tpu_custom_call.1} parent=1 // pred_fallthru
      _
    // Predicated region
    $region50: #{tpu_custom_call.1} parent=1 // pred_check
      _
    $region51: #{tpu_custom_call.1} parent=1 // pred_check_branch
      %100 = sbr.rel (0) target = $region53
    $region52: #{tpu_custom_call.1} parent=1 // pred_region
      %101 = dma.done [#allocation13], 48
    $region53: #{tpu_custom_call.1} parent=1 // pred_fallthru
      _
    %v103 = vld [vmem:[#allocation3] sm:$0xff]
    %v104 = vpack.c.bf16 %v103, %v103
    %v105 = vld [vmem:[#allocation6] sm:$0xff]
    %v106 = vld [vmem:[#allocation6 + $0x8] sm:$0xff]
    %v107 = vld [vmem:[#allocation6 + $0x10] sm:$0x33]
    %v108 = vld [vmem:[#allocation6 + $0x18] sm:$0x33]
    %v109 = vld [vmem:[#allocation8] sm:$0xf]
    %v111 = vlaneseq
    %v112 = vshrl.u32 %v111, 7
    %v113 = vsub.s32 0, %v112
    %v114 = vrot.slane %v109, %v113
    %v115 = vlaneseq
    %v116 = vshrl.u32 %v115, 7
    %v117 = vsub.s32 1, %v116
    %v118 = vrot.slane %v109, %v117
    %v119 = vlaneseq
    %v120 = vshrl.u32 %v119, 7
    %v121 = vsub.s32 2, %v120
    %v122 = vrot.slane %v109, %v121
    %v123 = vlaneseq
    %v124 = vshrl.u32 %v123, 7
    %v125 = vsub.s32 3, %v124
    %v126 = vrot.slane %v109, %v125
    %v135 = vunpack.c.l.b16 %v105
    %v136 = vunpack.c.h.b16 %v105
    %v137 = vunpack.c.l.b16 %v106
    %v138 = vunpack.c.h.b16 %v106
    %v139 = vunpack.c.l.b16 %v107
    %v140 = vunpack.c.h.b16 %v107
    %v141 = vunpack.c.l.b16 %v108
    %v142 = vunpack.c.h.b16 %v108
    %v143 = vpack.c.b16 %v139, %v135
    %v144 = vpack.c.b16 %v140, %v136
    %v145 = vpack.c.b16 %v141, %v137
    %v146 = vpack.c.b16 %v142, %v138
    %vm147 = vcmask 97280
    %v149 = vsel %vm147, %v104, 0
    %vm151 = vcmask 1045504
    %v153 = vsel %vm151, %v143, 0
    %v156 = vsel %vm151, %v144, 0
    %v159 = vsel %vm151, %v145, 0
    %v162 = vsel %vm151, %v146, 0
    %164 = vmatprep.subr.bf16.mxu0 %v156
    %165 = vmatpush1.bf16.msra.mxu0 %v153
    %166 = vmatprep.subr.bf16.mxu0 0
    %167 = vmatpush1.bf16.msra.mxu0 0
    %168 = vmatprep.subr.bf16.mxu0 0
    %169 = vmatpush1.bf16.msra.mxu0 0
    %170 = vmatprep.subr.bf16.mxu0 0
    %171 = vmatpush1.bf16.msra.mxu0 0
    %172 = vmatprep.subr.bf16.mxu0 0
    %173 = vmatpush1.bf16.msra.mxu0 0
    %174 = vmatprep.subr.bf16.mxu0 0
    %175 = vmatpush1.bf16.msra.mxu0 0
    %176 = vmatprep.subr.bf16.mxu0 0
    %177 = vmatpush1.bf16.msra.mxu0 0
    %178 = vmatprep.subr.bf16.mxu0 0
    %179 = vmatpush1.bf16.msra.mxu0 0
    %180 = vmatprep.subr.bf16.mxu0 0
    %181 = vmatpush1.bf16.msra.mxu0 0
    %182 = vmatprep.subr.bf16.mxu0 0
    %183 = vmatpush1.bf16.msra.mxu0 0
    %184 = vmatprep.subr.bf16.mxu0 0
    %185 = vmatpush1.bf16.msra.mxu0 0
    %186 = vmatprep.subr.bf16.mxu0 0
    %187 = vmatpush1.bf16.msra.mxu0 0
    %188 = vmatprep.subr.bf16.mxu0 0
    %189 = vmatpush1.bf16.msra.mxu0 0
    %190 = vmatprep.subr.bf16.mxu0 0
    %191 = vmatpush1.bf16.msra.mxu0 0
    %192 = vmatprep.subr.bf16.mxu0 0
    %193 = vmatpush1.bf16.msra.mxu0 0
    %194 = vmatprep.subr.bf16.mxu0 0
    %195 = vmatpush1.bf16.msra.mxu0 0
    %196 = vmatprep.mubr.bf16.mxu0 0
    %197 = vmatmul.mubr.bf16.gmra.mrb[0].mxu0 %v149
    %v198 = vpop.f32.mrb[0].mxu0
    %v199 = vadd.f32 %v114, %v198
    %v200 = vpop.f32.mrb[0].mxu0
    %v201 = vadd.f32 %v118, %v200
    %v202 = vpop.f32.mrb[0].mxu0
    %v203 = vpop.f32.mrb[0].mxu0
    %204 = vdwg.mxu0
    %205 = vmatprep.subr.bf16.mxu0 %v162
    %206 = vmatpush1.bf16.msra.mxu0 %v159
    %207 = vmatprep.subr.bf16.mxu0 0
    %208 = vmatpush1.bf16.msra.mxu0 0
    %209 = vmatprep.subr.bf16.mxu0 0
    %210 = vmatpush1.bf16.msra.mxu0 0
    %211 = vmatprep.subr.bf16.mxu0 0
    %212 = vmatpush1.bf16.msra.mxu0 0
    %213 = vmatprep.subr.bf16.mxu0 0
    %214 = vmatpush1.bf16.msra.mxu0 0
    %215 = vmatprep.subr.bf16.mxu0 0
    %216 = vmatpush1.bf16.msra.mxu0 0
    %217 = vmatprep.subr.bf16.mxu0 0
    %218 = vmatpush1.bf16.msra.mxu0 0
    %219 = vmatprep.subr.bf16.mxu0 0
    %220 = vmatpush1.bf16.msra.mxu0 0
    %221 = vmatprep.subr.bf16.mxu0 0
    %222 = vmatpush1.bf16.msra.mxu0 0
    %223 = vmatprep.subr.bf16.mxu0 0
    %224 = vmatpush1.bf16.msra.mxu0 0
    %225 = vmatprep.subr.bf16.mxu0 0
    %226 = vmatpush1.bf16.msra.mxu0 0
    %227 = vmatprep.subr.bf16.mxu0 0
    %228 = vmatpush1.bf16.msra.mxu0 0
    %229 = vmatprep.subr.bf16.mxu0 0
    %230 = vmatpush1.bf16.msra.mxu0 0
    %231 = vmatprep.subr.bf16.mxu0 0
    %232 = vmatpush1.bf16.msra.mxu0 0
    %233 = vmatprep.subr.bf16.mxu0 0
    %234 = vmatpush1.bf16.msra.mxu0 0
    %235 = vmatprep.subr.bf16.mxu0 0
    %236 = vmatpush1.bf16.msra.mxu0 0
    %237 = vmatprep.mubr.bf16.mxu0 0
    %238 = vmatmul.mubr.bf16.gmra.mrb[0].mxu0 %v149
    %v239 = vpop.f32.mrb[0].mxu0
    %v240 = vadd.f32 %v122, %v239
    %v241 = vpop.f32.mrb[0].mxu0
    %v242 = vadd.f32 %v126, %v241
    %v243 = vpop.f32.mrb[0].mxu0
    %v244 = vpop.f32.mrb[0].mxu0
    %245 = vdwg.mxu0
    %v246 = vmax.f32 %v199, 0.0
    %v247 = vmax.f32 %v201, 0.0
    %v248 = vmax.f32 %v240, 0.0
    %v249 = vmax.f32 %v242, 0.0
    %v250 = vpack.c.bf16 %v246, %v246
    %v251 = vpack.c.bf16 %v247, %v247
    %v252 = vpack.c.bf16 %v248, %v248
    %v253 = vpack.c.bf16 %v249, %v249
    %v254 = vld [vmem:[#allocation9] sm:$0xff]
    %v255 = vld [vmem:[#allocation9 + $0x8] sm:$0xf]
    %v256 = vld [vmem:[#allocation9 + $0xc] sm:$0xff]
    %v257 = vld [vmem:[#allocation9 + $0x14] sm:$0xf]
    %v258 = vld [vmem:[#allocation9 + $0x18] sm:$0xff]
    %v259 = vld [vmem:[#allocation9 + $0x20] sm:$0xf]
    %v260 = vld [vmem:[#allocation9 + $0x24] sm:$0xff]
    %v261 = vld [vmem:[#allocation9 + $0x2c] sm:$0xf]
    %v262 = vld [vmem:[#allocation9 + $0x30] sm:$0xff]
    %v263 = vld [vmem:[#allocation9 + $0x38] sm:$0xf]
    %v264 = vld [vmem:[#allocation9 + $0x3c] sm:$0xff]
    %v265 = vld [vmem:[#allocation9 + $0x44] sm:$0xf]
    %v266 = vld [vmem:[#allocation9 + $0x48] sm:$0xff]
    %v267 = vld [vmem:[#allocation9 + $0x50] sm:$0xf]
    %v268 = vld [vmem:[#allocation9 + $0x54] sm:$0xff]
    %v269 = vld [vmem:[#allocation9 + $0x5c] sm:$0xf]
    %v270 = vld [vmem:[#allocation9 + $0x60] sm:$0xff]
    %v271 = vld [vmem:[#allocation9 + $0x68] sm:$0xf]
    %v272 = vld [vmem:[#allocation9 + $0x6c] sm:$0xff]
    %v273 = vld [vmem:[#allocation9 + $0x74] sm:$0xf]
    %v274 = vld [vmem:[#allocation9 + $0x78] sm:$0xff]
    %v275 = vld [vmem:[#allocation9 + $0x80] sm:$0xf]
    %v276 = vld [vmem:[#allocation9 + $0x84] sm:$0xff]
    %v277 = vld [vmem:[#allocation9 + $0x8c] sm:$0xf]
    %v278 = vld [vmem:[#allocation9 + $0x90] sm:$0xff]
    %v279 = vld [vmem:[#allocation9 + $0x98] sm:$0xf]
    %v280 = vld [vmem:[#allocation9 + $0x9c] sm:$0xff]
    %v281 = vld [vmem:[#allocation9 + $0xa4] sm:$0xf]
    %v282 = vld [vmem:[#allocation9 + $0xa8] sm:$0xff]
    %v283 = vld [vmem:[#allocation9 + $0xb0] sm:$0xf]
    %v284 = vld [vmem:[#allocation9 + $0xb4] sm:$0xff]
    %v285 = vld [vmem:[#allocation9 + $0xbc] sm:$0xf]
    %v286 = vld [vmem:[#allocation9 + $0xc0] sm:$0xff]
    %v287 = vld [vmem:[#allocation9 + $0xc8] sm:$0xf]
    %v288 = vld [vmem:[#allocation9 + $0xcc] sm:$0xff]
    %v289 = vld [vmem:[#allocation9 + $0xd4] sm:$0xf]
    %v290 = vld [vmem:[#allocation9 + $0xd8] sm:$0xff]
    %v291 = vld [vmem:[#allocation9 + $0xe0] sm:$0xf]
    %v292 = vld [vmem:[#allocation9 + $0xe4] sm:$0xff]
    %v293 = vld [vmem:[#allocation9 + $0xec] sm:$0xf]
    %v294 = vld [vmem:[#allocation9 + $0xf0] sm:$0xff]
    %v295 = vld [vmem:[#allocation9 + $0xf8] sm:$0xf]
    %v296 = vld [vmem:[#allocation9 + $0xfc] sm:$0xff]
    %v297 = vld [vmem:[#allocation9 + $0x104] sm:$0xf]
    %v298 = vld [vmem:[#allocation9 + $0x108] sm:$0xff]
    %v299 = vld [vmem:[#allocation9 + $0x110] sm:$0xf]
    %v300 = vld [vmem:[#allocation9 + $0x114] sm:$0xff]
    %v301 = vld [vmem:[#allocation9 + $0x11c] sm:$0xf]
    %v302 = vld [vmem:[#allocation9 + $0x120] sm:$0xff]
    %v303 = vld [vmem:[#allocation9 + $0x128] sm:$0xf]
    %v304 = vld [vmem:[#allocation9 + $0x12c] sm:$0xff]
    %v305 = vld [vmem:[#allocation9 + $0x134] sm:$0xf]
    %v306 = vld [vmem:[#allocation9 + $0x138] sm:$0xff]
    %v307 = vld [vmem:[#allocation9 + $0x140] sm:$0xf]
    %v308 = vld [vmem:[#allocation9 + $0x144] sm:$0xff]
    %v309 = vld [vmem:[#allocation9 + $0x14c] sm:$0xf]
    %v310 = vld [vmem:[#allocation9 + $0x150] sm:$0xff]
    %v311 = vld [vmem:[#allocation9 + $0x158] sm:$0xf]
    %v312 = vld [vmem:[#allocation9 + $0x15c] sm:$0xff]
    %v313 = vld [vmem:[#allocation9 + $0x164] sm:$0xf]
    %v314 = vld [vmem:[#allocation9 + $0x168] sm:$0xff]
    %v315 = vld [vmem:[#allocation9 + $0x170] sm:$0xf]
    %v316 = vld [vmem:[#allocation9 + $0x174] sm:$0xff]
    %v317 = vld [vmem:[#allocation9 + $0x17c] sm:$0xf]
    %v318 = vld [vmem:[#allocation9 + $0x180] sm:$0xff]
    %v319 = vld [vmem:[#allocation9 + $0x188] sm:$0xf]
    %v320 = vld [vmem:[#allocation9 + $0x18c] sm:$0xff]
    %v321 = vld [vmem:[#allocation9 + $0x194] sm:$0xf]
    %v322 = vld [vmem:[#allocation9 + $0x198] sm:$0xff]
    %v323 = vld [vmem:[#allocation9 + $0x1a0] sm:$0xf]
    %v324 = vld [vmem:[#allocation9 + $0x1a4] sm:$0xff]
    %v325 = vld [vmem:[#allocation9 + $0x1ac] sm:$0xf]
    %v326 = vld [vmem:[#allocation9 + $0x1b0] sm:$0xff]
    %v327 = vld [vmem:[#allocation9 + $0x1b8] sm:$0xf]
    %v328 = vld [vmem:[#allocation9 + $0x1bc] sm:$0xff]
    %v329 = vld [vmem:[#allocation9 + $0x1c4] sm:$0xf]
    %v330 = vld [vmem:[#allocation9 + $0x1c8] sm:$0xff]
    %v331 = vld [vmem:[#allocation9 + $0x1d0] sm:$0xf]
    %v332 = vld [vmem:[#allocation9 + $0x1d4] sm:$0xff]
    %v333 = vld [vmem:[#allocation9 + $0x1dc] sm:$0xf]
    %v334 = vld [vmem:[#allocation9 + $0x1e0] sm:$0xff]
    %v335 = vld [vmem:[#allocation9 + $0x1e8] sm:$0xf]
    %v336 = vld [vmem:[#allocation9 + $0x1ec] sm:$0xff]
    %v337 = vld [vmem:[#allocation9 + $0x1f4] sm:$0xf]
    %v338 = vld [vmem:[#allocation9 + $0x1f8] sm:$0xff]
    %v339 = vld [vmem:[#allocation9 + $0x200] sm:$0xf]
    %v340 = vld [vmem:[#allocation9 + $0x204] sm:$0xff]
    %v341 = vld [vmem:[#allocation9 + $0x20c] sm:$0xf]
    %v342 = vld [vmem:[#allocation9 + $0x210] sm:$0xff]
    %v343 = vld [vmem:[#allocation9 + $0x218] sm:$0xf]
    %v344 = vld [vmem:[#allocation9 + $0x21c] sm:$0xff]
    %v345 = vld [vmem:[#allocation9 + $0x224] sm:$0xf]
    %v346 = vld [vmem:[#allocation9 + $0x228] sm:$0xff]
    %v347 = vld [vmem:[#allocation9 + $0x230] sm:$0xf]
    %v348 = vld [vmem:[#allocation9 + $0x234] sm:$0xff]
    %v349 = vld [vmem:[#allocation9 + $0x23c] sm:$0xf]
    %v350 = vld [vmem:[#allocation9 + $0x240] sm:$0xff]
    %v351 = vld [vmem:[#allocation9 + $0x248] sm:$0xf]
    %v352 = vld [vmem:[#allocation9 + $0x24c] sm:$0xff]
    %v353 = vld [vmem:[#allocation9 + $0x254] sm:$0xf]
    %v354 = vld [vmem:[#allocation11] sm:$0x7]
    %v356 = vlaneseq
    %v357 = vshrl.u32 %v356, 7
    %v358 = vsub.s32 0, %v357
    %v359 = vrot.slane %v354, %v358
    %v360 = vlaneseq
    %v361 = vshrl.u32 %v360, 7
    %v362 = vsub.s32 1, %v361
    %v363 = vrot.slane %v354, %v362
    %v364 = vlaneseq
    %v365 = vshrl.u32 %v364, 7
    %v366 = vsub.s32 2, %v365
    %v367 = vrot.slane %v354, %v366
    %v471 = vunpack.c.l.b16 %v254
    %v472 = vunpack.c.h.b16 %v254
    %v473 = vunpack.c.l.b16 %v255
    %v474 = vunpack.c.l.b16 %v256
    %v475 = vunpack.c.h.b16 %v256
    %v476 = vunpack.c.l.b16 %v257
    %v477 = vunpack.c.l.b16 %v258
    %v478 = vunpack.c.h.b16 %v258
    %v479 = vunpack.c.l.b16 %v259
    %v480 = vunpack.c.l.b16 %v260
    %v481 = vunpack.c.h.b16 %v260
    %v482 = vunpack.c.l.b16 %v261
    %v483 = vunpack.c.l.b16 %v262
    %v484 = vunpack.c.h.b16 %v262
    %v485 = vunpack.c.l.b16 %v263
    %v486 = vunpack.c.l.b16 %v264
    %v487 = vunpack.c.h.b16 %v264
    %v488 = vunpack.c.l.b16 %v265
    %v489 = vunpack.c.l.b16 %v266
    %v490 = vunpack.c.h.b16 %v266
    %v491 = vunpack.c.l.b16 %v267
    %v492 = vunpack.c.l.b16 %v268
    %v493 = vunpack.c.h.b16 %v268
    %v494 = vunpack.c.l.b16 %v269
    %v495 = vunpack.c.l.b16 %v270
    %v496 = vunpack.c.h.b16 %v270
    %v497 = vunpack.c.l.b16 %v271
    %v498 = vunpack.c.l.b16 %v272
    %v499 = vunpack.c.h.b16 %v272
    %v500 = vunpack.c.l.b16 %v273
    %v501 = vunpack.c.l.b16 %v274
    %v502 = vunpack.c.h.b16 %v274
    %v503 = vunpack.c.l.b16 %v275
    %v504 = vunpack.c.l.b16 %v276
    %v505 = vunpack.c.h.b16 %v276
    %v506 = vunpack.c.l.b16 %v277
    %v507 = vunpack.c.l.b16 %v278
    %v508 = vunpack.c.h.b16 %v278
    %v509 = vunpack.c.l.b16 %v279
    %v510 = vunpack.c.l.b16 %v280
    %v511 = vunpack.c.h.b16 %v280
    %v512 = vunpack.c.l.b16 %v281
    %v513 = vunpack.c.l.b16 %v282
    %v514 = vunpack.c.h.b16 %v282
    %v515 = vunpack.c.l.b16 %v283
    %v516 = vunpack.c.l.b16 %v284
    %v517 = vunpack.c.h.b16 %v284
    %v518 = vunpack.c.l.b16 %v285
    %v519 = vunpack.c.l.b16 %v286
    %v520 = vunpack.c.h.b16 %v286
    %v521 = vunpack.c.l.b16 %v287
    %v522 = vunpack.c.l.b16 %v288
    %v523 = vunpack.c.h.b16 %v288
    %v524 = vunpack.c.l.b16 %v289
    %v525 = vunpack.c.l.b16 %v290
    %v526 = vunpack.c.h.b16 %v290
    %v527 = vunpack.c.l.b16 %v291
    %v528 = vunpack.c.l.b16 %v292
    %v529 = vunpack.c.h.b16 %v292
    %v530 = vunpack.c.l.b16 %v293
    %v531 = vunpack.c.l.b16 %v294
    %v532 = vunpack.c.h.b16 %v294
    %v533 = vunpack.c.l.b16 %v295
    %v534 = vunpack.c.l.b16 %v296
    %v535 = vunpack.c.h.b16 %v296
    %v536 = vunpack.c.l.b16 %v297
    %v537 = vunpack.c.l.b16 %v298
    %v538 = vunpack.c.h.b16 %v298
    %v539 = vunpack.c.l.b16 %v299
    %v540 = vunpack.c.l.b16 %v300
    %v541 = vunpack.c.h.b16 %v300
    %v542 = vunpack.c.l.b16 %v301
    %v543 = vunpack.c.l.b16 %v302
    %v544 = vunpack.c.h.b16 %v302
    %v545 = vunpack.c.l.b16 %v303
    %v546 = vunpack.c.l.b16 %v304
    %v547 = vunpack.c.h.b16 %v304
    %v548 = vunpack.c.l.b16 %v305
    %v549 = vunpack.c.l.b16 %v306
    %v550 = vunpack.c.h.b16 %v306
    %v551 = vunpack.c.l.b16 %v307
    %v552 = vunpack.c.l.b16 %v308
    %v553 = vunpack.c.h.b16 %v308
    %v554 = vunpack.c.l.b16 %v309
    %v555 = vunpack.c.l.b16 %v310
    %v556 = vunpack.c.h.b16 %v310
    %v557 = vunpack.c.l.b16 %v311
    %v558 = vunpack.c.l.b16 %v312
    %v559 = vunpack.c.h.b16 %v312
    %v560 = vunpack.c.l.b16 %v313
    %v561 = vunpack.c.l.b16 %v314
    %v562 = vunpack.c.h.b16 %v314
    %v563 = vunpack.c.l.b16 %v315
    %v564 = vunpack.c.l.b16 %v316
    %v565 = vunpack.c.h.b16 %v316
    %v566 = vunpack.c.l.b16 %v317
    %v567 = vunpack.c.l.b16 %v318
    %v568 = vunpack.c.h.b16 %v318
    %v569 = vunpack.c.l.b16 %v319
    %v570 = vunpack.c.l.b16 %v320
    %v571 = vunpack.c.h.b16 %v320
    %v572 = vunpack.c.l.b16 %v321
    %v573 = vunpack.c.l.b16 %v322
    %v574 = vunpack.c.h.b16 %v322
    %v575 = vunpack.c.l.b16 %v323
    %v576 = vunpack.c.l.b16 %v324
    %v577 = vunpack.c.h.b16 %v324
    %v578 = vunpack.c.l.b16 %v325
    %v579 = vunpack.c.l.b16 %v326
    %v580 = vunpack.c.h.b16 %v326
    %v581 = vunpack.c.l.b16 %v327
    %v582 = vunpack.c.l.b16 %v328
    %v583 = vunpack.c.h.b16 %v328
    %v584 = vunpack.c.l.b16 %v329
    %v585 = vunpack.c.l.b16 %v330
    %v586 = vunpack.c.h.b16 %v330
    %v587 = vunpack.c.l.b16 %v331
    %v588 = vunpack.c.l.b16 %v332
    %v589 = vunpack.c.h.b16 %v332
    %v590 = vunpack.c.l.b16 %v333
    %v591 = vunpack.c.l.b16 %v334
    %v592 = vunpack.c.h.b16 %v334
    %v593 = vunpack.c.l.b16 %v335
    %v594 = vunpack.c.l.b16 %v336
    %v595 = vunpack.c.h.b16 %v336
    %v596 = vunpack.c.l.b16 %v337
    %v597 = vunpack.c.l.b16 %v338
    %v598 = vunpack.c.h.b16 %v338
    %v599 = vunpack.c.l.b16 %v339
    %v600 = vunpack.c.l.b16 %v340
    %v601 = vunpack.c.h.b16 %v340
    %v602 = vunpack.c.l.b16 %v341
    %v603 = vunpack.c.l.b16 %v342
    %v604 = vunpack.c.h.b16 %v342
    %v605 = vunpack.c.l.b16 %v343
    %v606 = vunpack.c.l.b16 %v344
    %v607 = vunpack.c.h.b16 %v344
    %v608 = vunpack.c.l.b16 %v345
    %v609 = vunpack.c.l.b16 %v346
    %v610 = vunpack.c.h.b16 %v346
    %v611 = vunpack.c.l.b16 %v347
    %v612 = vunpack.c.l.b16 %v348
    %v613 = vunpack.c.h.b16 %v348
    %v614 = vunpack.c.l.b16 %v349
    %v615 = vunpack.c.l.b16 %v350
    %v616 = vunpack.c.h.b16 %v350
    %v617 = vunpack.c.l.b16 %v351
    %v618 = vunpack.c.l.b16 %v352
    %v619 = vunpack.c.h.b16 %v352
    %v620 = vunpack.c.l.b16 %v353
    %v621 = vpack.c.b16 %v474, %v471
    %v622 = vpack.c.b16 %v475, %v472
    %v623 = vpack.c.b16 %v476, %v473
    %v624 = vpack.c.b16 %v480, %v477
    %v625 = vpack.c.b16 %v481, %v478
    %v626 = vpack.c.b16 %v482, %v479
    %v627 = vpack.c.b16 %v486, %v483
    %v628 = vpack.c.b16 %v487, %v484
    %v629 = vpack.c.b16 %v488, %v485
    %v630 = vpack.c.b16 %v492, %v489
    %v631 = vpack.c.b16 %v493, %v490
    %v632 = vpack.c.b16 %v494, %v491
    %v633 = vpack.c.b16 %v498, %v495
    %v634 = vpack.c.b16 %v499, %v496
    %v635 = vpack.c.b16 %v500, %v497
    %v636 = vpack.c.b16 %v504, %v501
    %v637 = vpack.c.b16 %v505, %v502
    %v638 = vpack.c.b16 %v506, %v503
    %v639 = vpack.c.b16 %v510, %v507
    %v640 = vpack.c.b16 %v511, %v508
    %v641 = vpack.c.b16 %v512, %v509
    %v642 = vpack.c.b16 %v516, %v513
    %v643 = vpack.c.b16 %v517, %v514
    %v644 = vpack.c.b16 %v518, %v515
    %v645 = vpack.c.b16 %v522, %v519
    %v646 = vpack.c.b16 %v523, %v520
    %v647 = vpack.c.b16 %v524, %v521
    %v648 = vpack.c.b16 %v528, %v525
    %v649 = vpack.c.b16 %v529, %v526
    %v650 = vpack.c.b16 %v530, %v527
    %v651 = vpack.c.b16 %v534, %v531
    %v652 = vpack.c.b16 %v535, %v532
    %v653 = vpack.c.b16 %v536, %v533
    %v654 = vpack.c.b16 %v540, %v537
    %v655 = vpack.c.b16 %v541, %v538
    %v656 = vpack.c.b16 %v542, %v539
    %v657 = vpack.c.b16 %v546, %v543
    %v658 = vpack.c.b16 %v547, %v544
    %v659 = vpack.c.b16 %v548, %v545
    %v660 = vpack.c.b16 %v552, %v549
    %v661 = vpack.c.b16 %v553, %v550
    %v662 = vpack.c.b16 %v554, %v551
    %v663 = vpack.c.b16 %v558, %v555
    %v664 = vpack.c.b16 %v559, %v556
    %v665 = vpack.c.b16 %v560, %v557
    %v666 = vpack.c.b16 %v564, %v561
    %v667 = vpack.c.b16 %v565, %v562
    %v668 = vpack.c.b16 %v566, %v563
    %v669 = vpack.c.b16 %v570, %v567
    %v670 = vpack.c.b16 %v571, %v568
    %v671 = vpack.c.b16 %v572, %v569
    %v672 = vpack.c.b16 %v576, %v573
    %v673 = vpack.c.b16 %v577, %v574
    %v674 = vpack.c.b16 %v578, %v575
    %v675 = vpack.c.b16 %v582, %v579
    %v676 = vpack.c.b16 %v583, %v580
    %v677 = vpack.c.b16 %v584, %v581
    %v678 = vpack.c.b16 %v588, %v585
    %v679 = vpack.c.b16 %v589, %v586
    %v680 = vpack.c.b16 %v590, %v587
    %v681 = vpack.c.b16 %v594, %v591
    %v682 = vpack.c.b16 %v595, %v592
    %v683 = vpack.c.b16 %v596, %v593
    %v684 = vpack.c.b16 %v600, %v597
    %v685 = vpack.c.b16 %v601, %v598
    %v686 = vpack.c.b16 %v602, %v599
    %v687 = vpack.c.b16 %v606, %v603
    %v688 = vpack.c.b16 %v607, %v604
    %v689 = vpack.c.b16 %v608, %v605
    %v690 = vpack.c.b16 %v612, %v609
    %v691 = vpack.c.b16 %v613, %v610
    %v692 = vpack.c.b16 %v614, %v611
    %v693 = vpack.c.b16 %v618, %v615
    %v694 = vpack.c.b16 %v619, %v616
    %v695 = vpack.c.b16 %v620, %v617
    %vm771 = vcmask 130048
    %v773 = vsel %vm771, %v253, 0
    %775 = vmatprep.subr.bf16.mxu0 %v622
    %776 = vmatpush1.bf16.msra.mxu0 %v621
    %777 = vmatprep.subr.bf16.mxu0 %v625
    %778 = vmatpush1.bf16.msra.mxu0 %v624
    %779 = vmatprep.subr.bf16.mxu0 %v628
    %780 = vmatpush1.bf16.msra.mxu0 %v627
    %781 = vmatprep.subr.bf16.mxu0 %v631
    %782 = vmatpush1.bf16.msra.mxu0 %v630
    %783 = vmatprep.subr.bf16.mxu0 %v634
    %784 = vmatpush1.bf16.msra.mxu0 %v633
    %785 = vmatprep.subr.bf16.mxu0 %v637
    %786 = vmatpush1.bf16.msra.mxu0 %v636
    %787 = vmatprep.subr.bf16.mxu0 %v640
    %788 = vmatpush1.bf16.msra.mxu0 %v639
    %789 = vmatprep.subr.bf16.mxu0 %v643
    %790 = vmatpush1.bf16.msra.mxu0 %v642
    %791 = vmatprep.subr.bf16.mxu0 %v646
    %792 = vmatpush1.bf16.msra.mxu0 %v645
    %793 = vmatprep.subr.bf16.mxu0 %v649
    %794 = vmatpush1.bf16.msra.mxu0 %v648
    %795 = vmatprep.subr.bf16.mxu0 %v652
    %796 = vmatpush1.bf16.msra.mxu0 %v651
    %797 = vmatprep.subr.bf16.mxu0 %v655
    %798 = vmatpush1.bf16.msra.mxu0 %v654
    %799 = vmatprep.subr.bf16.mxu0 %v658
    %800 = vmatpush1.bf16.msra.mxu0 %v657
    %801 = vmatprep.subr.bf16.mxu0 %v661
    %802 = vmatpush1.bf16.msra.mxu0 %v660
    %803 = vmatprep.subr.bf16.mxu0 %v664
    %804 = vmatpush1.bf16.msra.mxu0 %v663
    %805 = vmatprep.subr.bf16.mxu0 %v667
    %806 = vmatpush1.bf16.msra.mxu0 %v666
    %807 = vmatprep.mubr.bf16.mxu0 %v251
    %808 = vmatmul.mubr.bf16.gmra.mrb[0].mxu0 %v250
    %v809 = vpop.f32.mrb[0].mxu0
    %v810 = vadd.f32 %v359, %v809
    %v811 = vpop.f32.mrb[0].mxu0
    %v812 = vadd.f32 %v363, %v811
    %v813 = vpop.f32.mrb[0].mxu0
    %v814 = vpop.f32.mrb[0].mxu0
    %815 = vdwg.mxu0
    %816 = vmatprep.subr.bf16.mxu0 %v670
    %817 = vmatpush1.bf16.msra.mxu0 %v669
    %818 = vmatprep.subr.bf16.mxu0 %v673
    %819 = vmatpush1.bf16.msra.mxu0 %v672
    %820 = vmatprep.subr.bf16.mxu0 %v676
    %821 = vmatpush1.bf16.msra.mxu0 %v675
    %822 = vmatprep.subr.bf16.mxu0 %v679
    %823 = vmatpush1.bf16.msra.mxu0 %v678
    %824 = vmatprep.subr.bf16.mxu0 %v682
    %825 = vmatpush1.bf16.msra.mxu0 %v681
    %826 = vmatprep.subr.bf16.mxu0 %v685
    %827 = vmatpush1.bf16.msra.mxu0 %v684
    %828 = vmatprep.subr.bf16.mxu0 %v688
    %829 = vmatpush1.bf16.msra.mxu0 %v687
    %830 = vmatprep.subr.bf16.mxu0 %v691
    %831 = vmatpush1.bf16.msra.mxu0 %v690
    %832 = vmatprep.subr.bf16.mxu0 %v694
    %833 = vmatpush1.bf16.msra.mxu0 %v693
    %834 = vmatprep.subr.bf16.mxu0 0
    %835 = vmatpush1.bf16.msra.mxu0 0
    %836 = vmatprep.subr.bf16.mxu0 0
    %837 = vmatpush1.bf16.msra.mxu0 0
    %838 = vmatprep.subr.bf16.mxu0 0
    %839 = vmatpush1.bf16.msra.mxu0 0
    %840 = vmatprep.subr.bf16.mxu0 0
    %841 = vmatpush1.bf16.msra.mxu0 0
    %842 = vmatprep.subr.bf16.mxu0 0
    %843 = vmatpush1.bf16.msra.mxu0 0
    %844 = vmatprep.subr.bf16.mxu0 0
    %845 = vmatpush1.bf16.msra.mxu0 0
    %846 = vmatprep.subr.bf16.mxu0 0
    %847 = vmatpush1.bf16.msra.mxu0 0
    %848 = vmatprep.mubr.bf16.mxu0 %v773
    %849 = vmatmul.mubr.bf16.gmra.mrb[0].mxu0 %v252
    %v850 = vpop.f32.mrb[0].mxu0
    %v851 = vadd.f32 %v810, %v850
    %v852 = vpop.f32.mrb[0].mxu0
    %v853 = vadd.f32 %v812, %v852
    %v854 = vpop.f32.mrb[0].mxu0
    %v855 = vpop.f32.mrb[0].mxu0
    %856 = vdwg.mxu0
    %857 = vmatprep.subr.bf16.mxu0 0
    %858 = vmatpush1.bf16.msra.mxu0 %v623
    %859 = vmatprep.subr.bf16.mxu0 0
    %860 = vmatpush1.bf16.msra.mxu0 %v626
    %861 = vmatprep.subr.bf16.mxu0 0
    %862 = vmatpush1.bf16.msra.mxu0 %v629
    %863 = vmatprep.subr.bf16.mxu0 0
    %864 = vmatpush1.bf16.msra.mxu0 %v632
    %865 = vmatprep.subr.bf16.mxu0 0
    %866 = vmatpush1.bf16.msra.mxu0 %v635
    %867 = vmatprep.subr.bf16.mxu0 0
    %868 = vmatpush1.bf16.msra.mxu0 %v638
    %869 = vmatprep.subr.bf16.mxu0 0
    %870 = vmatpush1.bf16.msra.mxu0 %v641
    %871 = vmatprep.subr.bf16.mxu0 0
    %872 = vmatpush1.bf16.msra.mxu0 %v644
    %873 = vmatprep.subr.bf16.mxu0 0
    %874 = vmatpush1.bf16.msra.mxu0 %v647
    %875 = vmatprep.subr.bf16.mxu0 0
    %876 = vmatpush1.bf16.msra.mxu0 %v650
    %877 = vmatprep.subr.bf16.mxu0 0
    %878 = vmatpush1.bf16.msra.mxu0 %v653
    %879 = vmatprep.subr.bf16.mxu0 0
    %880 = vmatpush1.bf16.msra.mxu0 %v656
    %881 = vmatprep.subr.bf16.mxu0 0
    %882 = vmatpush1.bf16.msra.mxu0 %v659
    %883 = vmatprep.subr.bf16.mxu0 0
    %884 = vmatpush1.bf16.msra.mxu0 %v662
    %885 = vmatprep.subr.bf16.mxu0 0
    %886 = vmatpush1.bf16.msra.mxu0 %v665
    %887 = vmatprep.subr.bf16.mxu0 0
    %888 = vmatpush1.bf16.msra.mxu0 %v668
    %889 = vmatprep.mubr.bf16.mxu0 %v251
    %890 = vmatmul.mubr.bf16.gmra.mrb[0].mxu0 %v250
    %v891 = vpop.f32.mrb[0].mxu0
    %v892 = vadd.f32 %v367, %v891
    %v893 = vpop.f32.mrb[0].mxu0
    %v894 = vpop.f32.mrb[0].mxu0
    %v895 = vpop.f32.mrb[0].mxu0
    %896 = vdwg.mxu0
    %897 = vmatprep.subr.bf16.mxu0 0
    %898 = vmatpush1.bf16.msra.mxu0 %v671
    %899 = vmatprep.subr.bf16.mxu0 0
    %900 = vmatpush1.bf16.msra.mxu0 %v674
    %901 = vmatprep.subr.bf16.mxu0 0
    %902 = vmatpush1.bf16.msra.mxu0 %v677
    %903 = vmatprep.subr.bf16.mxu0 0
    %904 = vmatpush1.bf16.msra.mxu0 %v680
    %905 = vmatprep.subr.bf16.mxu0 0
    %906 = vmatpush1.bf16.msra.mxu0 %v683
    %907 = vmatprep.subr.bf16.mxu0 0
    %908 = vmatpush1.bf16.msra.mxu0 %v686
    %909 = vmatprep.subr.bf16.mxu0 0
    %910 = vmatpush1.bf16.msra.mxu0 %v689
    %911 = vmatprep.subr.bf16.mxu0 0
    %912 = vmatpush1.bf16.msra.mxu0 %v692
    %913 = vmatprep.subr.bf16.mxu0 0
    %914 = vmatpush1.bf16.msra.mxu0 %v695
    %915 = vmatprep.subr.bf16.mxu0 0
    %916 = vmatpush1.bf16.msra.mxu0 0
    %917 = vmatprep.subr.bf16.mxu0 0
    %918 = vmatpush1.bf16.msra.mxu0 0
    %919 = vmatprep.subr.bf16.mxu0 0
    %920 = vmatpush1.bf16.msra.mxu0 0
    %921 = vmatprep.subr.bf16.mxu0 0
    %922 = vmatpush1.bf16.msra.mxu0 0
    %923 = vmatprep.subr.bf16.mxu0 0
    %924 = vmatpush1.bf16.msra.mxu0 0
    %925 = vmatprep.subr.bf16.mxu0 0
    %926 = vmatpush1.bf16.msra.mxu0 0
    %927 = vmatprep.subr.bf16.mxu0 0
    %928 = vmatpush1.bf16.msra.mxu0 0
    %929 = vmatprep.mubr.bf16.mxu0 %v773
    %930 = vmatmul.mubr.bf16.gmra.mrb[0].mxu0 %v252
    %v931 = vpop.f32.mrb[0].mxu0
    %v932 = vadd.f32 %v892, %v931
    %v933 = vpop.f32.mrb[0].mxu0
    %v934 = vpop.f32.mrb[0].mxu0
    %v935 = vpop.f32.mrb[0].mxu0
    %936 = vdwg.mxu0
    %v937 = vmax.f32 %v851, 0.0
    %v938 = vmax.f32 %v853, 0.0
    %v939 = vmax.f32 %v932, 0.0
    %v940 = vld [vmem:[#allocation12] sm:$0x7]
    %v942 = vlaneseq
    %v943 = vshrl.u32 %v942, 7
    %v944 = vsub.s32 0, %v943
    %v945 = vrot.slane %v940, %v944
    %v946 = vlaneseq
    %v947 = vshrl.u32 %v946, 7
    %v948 = vsub.s32 1, %v947
    %v949 = vrot.slane %v940, %v948
    %v950 = vlaneseq
    %v951 = vshrl.u32 %v950, 7
    %v952 = vsub.s32 2, %v951
    %v953 = vrot.slane %v940, %v952
    %v957 = vmul.f32 %v937, %v945
    %v958 = vmul.f32 %v938, %v949
    %v959 = vmul.f32 %v939, %v953
    %v960 = vadd.f32 %v957, %v958
    %vm961 = vcmask 359424
    %v962 = vsel %vm961, %v959, 0.0
    %v963 = vadd.f32 %v960, %v962
    %964 = vadd.xlane.f32.xlu0 %v963
    %v965 = vpop.xlane.xlu0 %964
    %s966 = sld [smem:[#allocation2]]
    %v967 = vstv %s966
    %v968 = vadd.f32 %v965, %v967
    %vm969 = vcmask 7168
    %970 = vst.msk [vmem:[#allocation14] sm:$0xff] %vm969, %v968
    // Predicated region
    $region54: #{tpu_custom_call.1} parent=1 // pred_check
      _
    $region55: #{tpu_custom_call.1} parent=1 // pred_check_branch
      %972 = sbr.rel (0) target = $region57
    $region56: #{tpu_custom_call.1} parent=1 // pred_region
      %s974 = ssub.s32 128, 128
      %975 = vsyncadd [#allocation5], %s974
      %s977 = sshll.u32 [#allocation14], 4
      %s978 = int_to_ptr.vmem [resolvable:$true] %s977
      %980 = dma.vmem_to_hbm [thread:$0]  %s978, 128, %s7, [#allocation5]
    $region57: #{tpu_custom_call.1} parent=1 // pred_fallthru
      _
    // Predicated region
    $region58: #{tpu_custom_call.1} parent=1 // pred_check
      _
    $region59: #{tpu_custom_call.1} parent=1 // pred_check_branch
      %982 = sbr.rel (0) target = $region61
    $region60: #{tpu_custom_call.1} parent=1 // pred_region
      %983 = dma.done [#allocation5], 128
    $region61: #{tpu_custom_call.1} parent=1 // pred_fallthru
      _
    %984 = vsyncpa [#allocation4], 1
    %985 = vsyncpa [#allocation7], 1
    %986 = vsyncpa [#allocation10], 1
    %987 = vsyncpa [#allocation13], 1
    %988 = vsyncpa [#allocation5], 1

</llo_original>
